<compile_context>
chip_gen: v5e
topology: v5e:2x2
jax: 0.10.0
libtpu: 0.0.40
codegen_flags: <defaults>
</compile_context>

<pallas_src>
import functools

import jax
import jax.numpy as jnp
from jax.experimental import pallas as pl
from jax.experimental.pallas import tpu as pltpu

C_PAD = 128                       # pad every channel dim to the lane width
VMEM_LIMIT = 32 * 1024 * 1024     # explicit scoped-VMEM budget (safe v5e..v7x)
BN_EPS = 1e-5


def _round_up(x, m):
    return (x + m - 1) // m * m


def _pick_tile_m(m, target=1024):
    """Largest row tile <= target that divides m (multiple of 8 when tiling)."""
    if m <= target:
        return m
    for t in range(target - target % 8, 7, -8):
        if m % t == 0:
            return t
    return m  # fallback: one full block (block == full dim is always legal)


# ----------------------------------------------------------------------------
# Layer 1 kernels: triangle features folded into the conv weights.
#   y = X@Wx + Xprev@Wp + Xnext@Wn + bias,  Xprev/Xnext via circular roll.
# ----------------------------------------------------------------------------
def tri_stats_kernel(x_ref, wx_ref, wp_ref, wn_ref, b_ref, g_ref, bt_ref,
                     stats_ref, sum_s, sq_s, *, eps, inv_m):
    b = pl.program_id(0)

    @pl.when(b == 0)
    def _init():
        sum_s[...] = jnp.zeros_like(sum_s)
        sq_s[...] = jnp.zeros_like(sq_s)

    x = x_ref[0]                                  # (N, Fp)
    n = x.shape[0]
    x_prev = pltpu.roll(x, 1, 0)                  # X[(i-1) % N]
    x_next = pltpu.roll(x, n - 1, 0)              # X[(i+1) % N]
    y = (jnp.dot(x, wx_ref[...], preferred_element_type=jnp.float32)
         + jnp.dot(x_prev, wp_ref[...], preferred_element_type=jnp.float32)
         + jnp.dot(x_next, wn_ref[...], preferred_element_type=jnp.float32)
         + b_ref[...])
    sum_s[...] += jnp.sum(y, axis=0, keepdims=True)
    sq_s[...] += jnp.sum(y * y, axis=0, keepdims=True)

    @pl.when(b == pl.num_programs(0) - 1)
    def _finalize():
        mean = sum_s[...] * inv_m
        var = jnp.maximum(sq_s[...] * inv_m - mean * mean, 0.0)
        scale = g_ref[...] * jax.lax.rsqrt(var + eps)
        stats_ref[0:1, :] = scale
        stats_ref[1:2, :] = bt_ref[...] - mean * scale


def tri_apply_kernel(x_ref, wx_ref, wp_ref, wn_ref, b_ref, stats_ref, o_ref):
    x = x_ref[0]
    n = x.shape[0]
    x_prev = pltpu.roll(x, 1, 0)
    x_next = pltpu.roll(x, n - 1, 0)
    y = (jnp.dot(x, wx_ref[...], preferred_element_type=jnp.float32)
         + jnp.dot(x_prev, wp_ref[...], preferred_element_type=jnp.float32)
         + jnp.dot(x_next, wn_ref[...], preferred_element_type=jnp.float32)
         + b_ref[...])
    o_ref[0] = jnp.maximum(y * stats_ref[0:1, :] + stats_ref[1:2, :], 0.0)


def tri_stats(x, wx, wp, wn, bias, gamma, beta, eps, m_total):
    B, N, Fp = x.shape
    C = wx.shape[1]
    vec = pl.BlockSpec((1, C), lambda b: (0, 0))
    wsp = pl.BlockSpec((Fp, C), lambda b: (0, 0))
    return pl.pallas_call(
        functools.partial(tri_stats_kernel, eps=eps, inv_m=1.0 / m_total),
        out_shape=jax.ShapeDtypeStruct((2, C), jnp.float32),
        grid=(B,),
        in_specs=[pl.BlockSpec((1, N, Fp), lambda b: (b, 0, 0)),
                  wsp, wsp, wsp, vec, vec, vec],
        out_specs=pl.BlockSpec((2, C), lambda b: (0, 0)),
        scratch_shapes=[pltpu.VMEM((1, C), jnp.float32),
                        pltpu.VMEM((1, C), jnp.float32)],
        compiler_params=pltpu.CompilerParams(
            dimension_semantics=("arbitrary",),
            vmem_limit_bytes=VMEM_LIMIT),
    )(x, wx, wp, wn, bias, gamma, beta)


def tri_apply(x, wx, wp, wn, bias, stats):
    B, N, Fp = x.shape
    C = wx.shape[1]
    wsp = pl.BlockSpec((Fp, C), lambda b: (0, 0))
    return pl.pallas_call(
        tri_apply_kernel,
        out_shape=jax.ShapeDtypeStruct((B, N, C), jnp.float32),
        grid=(B,),
        in_specs=[pl.BlockSpec((1, N, Fp), lambda b: (b, 0, 0)),
                  wsp, wsp, wsp,
                  pl.BlockSpec((1, C), lambda b: (0, 0)),
                  pl.BlockSpec((2, C), lambda b: (0, 0))],
        out_specs=pl.BlockSpec((1, N, C), lambda b: (b, 0, 0)),
        compiler_params=pltpu.CompilerParams(
            dimension_semantics=("parallel",),
            vmem_limit_bytes=VMEM_LIMIT),
    )(x, wx, wp, wn, bias, stats)


# ----------------------------------------------------------------------------
# Layers >= 2 kernels: plain 1x1 conv (matmul) + BN(train) + ReLU, row-tiled.
# ----------------------------------------------------------------------------
def mlp_stats_kernel(h_ref, w_ref, b_ref, g_ref, bt_ref,
                     stats_ref, sum_s, sq_s, *, eps, inv_m):
    i = pl.program_id(0)

    @pl.when(i == 0)
    def _init():
        sum_s[...] = jnp.zeros_like(sum_s)
        sq_s[...] = jnp.zeros_like(sq_s)

    y = jnp.dot(h_ref[...], w_ref[...],
                preferred_element_type=jnp.float32) + b_ref[...]
    sum_s[...] += jnp.sum(y, axis=0, keepdims=True)
    sq_s[...] += jnp.sum(y * y, axis=0, keepdims=True)

    @pl.when(i == pl.num_programs(0) - 1)
    def _finalize():
        mean = sum_s[...] * inv_m
        var = jnp.maximum(sq_s[...] * inv_m - mean * mean, 0.0)
        scale = g_ref[...] * jax.lax.rsqrt(var + eps)
        stats_ref[0:1, :] = scale
        stats_ref[1:2, :] = bt_ref[...] - mean * scale


def mlp_apply_kernel(h_ref, w_ref, b_ref, stats_ref, o_ref):
    y = jnp.dot(h_ref[...], w_ref[...],
                preferred_element_type=jnp.float32) + b_ref[...]
    o_ref[...] = jnp.maximum(y * stats_ref[0:1, :] + stats_ref[1:2, :], 0.0)


def mlp_stats(h, w, bias, gamma, beta, eps, m_total):
    M, Cin = h.shape
    C = w.shape[1]
    tm = _pick_tile_m(M)
    vec = pl.BlockSpec((1, C), lambda i: (0, 0))
    return pl.pallas_call(
        functools.partial(mlp_stats_kernel, eps=eps, inv_m=1.0 / m_total),
        out_shape=jax.ShapeDtypeStruct((2, C), jnp.float32),
        grid=(M // tm,),
        in_specs=[pl.BlockSpec((tm, Cin), lambda i: (i, 0)),
                  pl.BlockSpec((Cin, C), lambda i: (0, 0)),
                  vec, vec, vec],
        out_specs=pl.BlockSpec((2, C), lambda i: (0, 0)),
        scratch_shapes=[pltpu.VMEM((1, C), jnp.float32),
                        pltpu.VMEM((1, C), jnp.float32)],
        compiler_params=pltpu.CompilerParams(
            dimension_semantics=("arbitrary",),
            vmem_limit_bytes=VMEM_LIMIT),
    )(h, w, bias, gamma, beta)


def mlp_apply(h, w, bias, stats):
    M, Cin = h.shape
    C = w.shape[1]
    tm = _pick_tile_m(M)
    return pl.pallas_call(
        mlp_apply_kernel,
        out_shape=jax.ShapeDtypeStruct((M, C), jnp.float32),
        grid=(M // tm,),
        in_specs=[pl.BlockSpec((tm, Cin), lambda i: (i, 0)),
                  pl.BlockSpec((Cin, C), lambda i: (0, 0)),
                  pl.BlockSpec((1, C), lambda i: (0, 0)),
                  pl.BlockSpec((2, C), lambda i: (0, 0))],
        out_specs=pl.BlockSpec((tm, C), lambda i: (i, 0)),
        compiler_params=pltpu.CompilerParams(
            dimension_semantics=("parallel",),
            vmem_limit_bytes=VMEM_LIMIT),
    )(h, w, bias, stats)


# ----------------------------------------------------------------------------
# Parameter preparation: fold triangle features into layer-1 weights, pad all
# channel dims to 128 lanes (zero padding -> semantically inert).
# ----------------------------------------------------------------------------
def prepare_params(raw_params, feat_dim):
    """raw_params: list of (w:(Cin,Cout), b:(Cout,), gamma:(Cout,), beta:(Cout,))."""
    F = feat_dim
    Fp = _round_up(F, 8)
    prepared = []
    for li, (w, b, gamma, beta) in enumerate(raw_params):
        cin, cout = w.shape
        if li == 0:
            assert cin == 4 * F
            W0, W1, W2, W3 = w[0:F], w[F:2 * F], w[2 * F:3 * F], w[3 * F:4 * F]
            # feats@W == X@(W0+W1+W2) + Xprev@(-W1-W3) + Xnext@(W3-W2)
            wx = W0 + W1 + W2
            wp = -(W1 + W3)
            wn = W3 - W2
            pad_w = lambda m: jnp.pad(m, ((0, Fp - F), (0, C_PAD - cout)))
            w_packed = (pad_w(wx), pad_w(wp), pad_w(wn))
        else:
            w_packed = (jnp.pad(w, ((0, C_PAD - cin), (0, C_PAD - cout))),)
        bp = jnp.pad(b, (0, C_PAD - cout)).reshape(1, C_PAD)
        gp = jnp.pad(gamma, (0, C_PAD - cout)).reshape(1, C_PAD)
        btp = jnp.pad(beta, (0, C_PAD - cout)).reshape(1, C_PAD)
        prepared.append((w_packed, bp, gp, btp, cout))
    return prepared


def triangle_conv_forward(x, prepared, eps=BN_EPS):
    """x: (B, N, F) float32 -> (B, N, C_last) == PyTorch out.permute(0, 2, 1)."""
    B, N, F = x.shape
    Fp = _round_up(F, 8)
    x_pad = jnp.pad(x, ((0, 0), (0, 0), (0, Fp - F)))
    m_total = B * N

    # Layer 1: triangle-folded conv + BN + ReLU (no (B,N,4F) materialization).
    (wx, wp, wn), bias, gamma, beta, _ = prepared[0]
    stats = tri_stats(x_pad, wx, wp, wn, bias, gamma, beta, eps, m_total)
    h = tri_apply(x_pad, wx, wp, wn, bias, stats)       # (B, N, C_PAD)

    h = h.reshape(B * N, C_PAD)
    for (w_packed, bias, gamma, beta, _) in prepared[1:]:
        w = w_packed[0]
        stats = mlp_stats(h, w, bias, gamma, beta, eps, m_total)
        h = mlp_apply(h, w, bias, stats)                # (B*N, C_PAD)

    c_last = prepared[-1][4]
    return h.reshape(B, N, C_PAD)[:, :, :c_last]


# ----------------------------------------------------------------------------
# Synthetic params + pure-JAX reference (faithful to the PyTorch module).
# ----------------------------------------------------------------------------
def init_params(layers, key):
    params = []
    for i in range(len(layers) - 1):
        cin = 4 * layers[i] if i == 0 else layers[i]
        cout = layers[i + 1]
        key, kw, kb, kg, kbt = jax.random.split(key, 5)
        w = jax.random.normal(kw, (cin, cout), jnp.float32) * 0.1
        b = jax.random.normal(kb, (cout,), jnp.float32) * 0.05
        gamma = 1.0 + 0.1 * jax.random.normal(kg, (cout,), jnp.float32)
        beta = 0.05 * jax.random.normal(kbt, (cout,), jnp.float32)
        params.append((w, b, gamma, beta))
    return params


def reference_forward(x, raw_params, eps=BN_EPS):
    xp = jnp.roll(x, 1, axis=1)     # X[i-1]
    xn = jnp.roll(x, -1, axis=1)    # X[i+1]
    dp = x - xp
    dn = x - xn
    feats = jnp.concatenate([x, dp, dn, dp - dn], axis=-1)
    h = feats.reshape(-1, feats.shape[-1])
    for (w, b, gamma, beta) in raw_params:
        y = h @ w + b
        mean = jnp.mean(y, axis=0, keepdims=True)
        var = jnp.mean((y - mean) ** 2, axis=0, keepdims=True)
        y = (y - mean) / jnp.sqrt(var + eps) * gamma + beta
        h = jnp.maximum(y, 0.0)
    return h.reshape(x.shape[0], x.shape[1], -1)


if __name__ == "__main__":
    key = jax.random.PRNGKey(0)
    B, N, F = 2, 16, 3                 # small point cloud: 2 batches, 16 pts, xyz
    layers = [F, 32, 64]               # TriangleConv(layers); first conv sees 4*F

    key, kx = jax.random.split(key)
    X = jax.random.normal(kx, (B, N, F), jnp.float32)
    raw_params = init_params(layers, key)
    prepared = prepare_params(raw_params, F)

    out = triangle_conv_forward(X, prepared)
    out = jax.block_until_ready(out)

    ref = reference_forward(X, raw_params)
    assert out.shape == (B, N, layers[-1]), out.shape
    max_err = float(jnp.max(jnp.abs(out - ref)))
    assert max_err < 1e-3, max_err

    print("KERNEL_OK")
</pallas_src>

<mosaic_0001>
module attributes {stable_mosaic.version = 11 : i64} {
  func.func @tri_stats_kernel(%arg0: i32, %arg1: memref<1x16x8xf32, #tpu.memory_space<vmem>>, %arg2: memref<8x128xf32, #tpu.memory_space<vmem>>, %arg3: memref<8x128xf32, #tpu.memory_space<vmem>>, %arg4: memref<8x128xf32, #tpu.memory_space<vmem>>, %arg5: memref<1x128xf32, #tpu.memory_space<vmem>>, %arg6: memref<1x128xf32, #tpu.memory_space<vmem>>, %arg7: memref<1x128xf32, #tpu.memory_space<vmem>>, %arg8: memref<2x128xf32, #tpu.memory_space<vmem>>, %arg9: memref<1x128xf32, #tpu.memory_space<vmem>>, %arg10: memref<1x128xf32, #tpu.memory_space<vmem>>) attributes {dimension_semantics = [#tpu.dimension_semantics<arbitrary>], iteration_bounds = array<i64: 2>, scalar_prefetch = 0 : i64, scratch_operands = 2 : i64, tpu.core_type = #tpu.core_type<tc>, window_params = [{transform_indices = @transform_0, window_bounds = array<i64: 1, 16, 8>}, {pipeline_mode = #tpu.pipeline_mode<synchronous>, transform_indices = @transform_1, window_bounds = array<i64: 8, 128>}, {pipeline_mode = #tpu.pipeline_mode<synchronous>, transform_indices = @transform_2, window_bounds = array<i64: 8, 128>}, {pipeline_mode = #tpu.pipeline_mode<synchronous>, transform_indices = @transform_3, window_bounds = array<i64: 8, 128>}, {pipeline_mode = #tpu.pipeline_mode<synchronous>, transform_indices = @transform_4, window_bounds = array<i64: 1, 128>}, {pipeline_mode = #tpu.pipeline_mode<synchronous>, transform_indices = @transform_5, window_bounds = array<i64: 1, 128>}, {pipeline_mode = #tpu.pipeline_mode<synchronous>, transform_indices = @transform_6, window_bounds = array<i64: 1, 128>}, {pipeline_mode = #tpu.pipeline_mode<synchronous>, transform_indices = @transform_7, window_bounds = array<i64: 2, 128>}]} {
    %c0_i32 = arith.constant 0 : i32
    %0 = arith.cmpi eq, %arg0, %c0_i32 : i32
    %1 = arith.extui %0 : i1 to i32
    %c0_i32_0 = arith.constant 0 : i32
    %2 = arith.cmpi ne, %1, %c0_i32_0 : i32
    scf.if %2 {
      %cst_25 = arith.constant 0.000000e+00 : f32
      %32 = vector.broadcast %cst_25 : f32 to vector<1x128xf32>
      %c0_26 = arith.constant 0 : index
      %c0_27 = arith.constant 0 : index
      %33 = vector.load %arg9[%c0_26, %c0_27] : memref<1x128xf32, #tpu.memory_space<vmem>>, vector<1x128xf32>
      tpu.vector_store %arg9[%c0_26, %c0_27], %32 {strides = array<i32>} : memref<1x128xf32, #tpu.memory_space<vmem>>, vector<1x128xf32>,
      %cst_28 = arith.constant 0.000000e+00 : f32
      %34 = vector.broadcast %cst_28 : f32 to vector<1x128xf32>
      %c0_29 = arith.constant 0 : index
      %c0_30 = arith.constant 0 : index
      %35 = vector.load %arg10[%c0_29, %c0_30] : memref<1x128xf32, #tpu.memory_space<vmem>>, vector<1x128xf32>
      tpu.vector_store %arg10[%c0_29, %c0_30], %34 {strides = array<i32>} : memref<1x128xf32, #tpu.memory_space<vmem>>, vector<1x128xf32>,
    } else {
    }
    %c0 = arith.constant 0 : index
    %c0_1 = arith.constant 0 : index
    %c0_2 = arith.constant 0 : index
    %3 = vector.load %arg1[%c0, %c0_1, %c0_2] : memref<1x16x8xf32, #tpu.memory_space<vmem>>, vector<1x16x8xf32>
    %4 = vector.shape_cast %3 : vector<1x16x8xf32> to vector<16x8xf32>
    %c1_i32 = arith.constant 1 : i32
    %5 = tpu.dynamic_rotate %4 by %c1_i32 dim 0 : vector<16x8xf32>, i32 -> vector<16x8xf32>
    %c15_i32 = arith.constant 15 : i32
    %6 = tpu.dynamic_rotate %4 by %c15_i32 dim 0 : vector<16x8xf32>, i32 -> vector<16x8xf32>
    %c0_3 = arith.constant 0 : index
    %c0_4 = arith.constant 0 : index
    %7 = vector.load %arg2[%c0_3, %c0_4] : memref<8x128xf32, #tpu.memory_space<vmem>>, vector<8x128xf32>
    %cst = arith.constant dense<0.000000e+00> : vector<16x128xf32>
    %8 = tpu.matmul %4, %7, %cst {dimension_numbers = #tpu.dot_dimension_numbers<[1], [0], [0], [1], [0, 0, 1, 1], [], []>} : vector<16x8xf32>, vector<8x128xf32>, vector<16x128xf32> -> vector<16x128xf32>
    %c0_5 = arith.constant 0 : index
    %c0_6 = arith.constant 0 : index
    %9 = vector.load %arg3[%c0_5, %c0_6] : memref<8x128xf32, #tpu.memory_space<vmem>>, vector<8x128xf32>
    %cst_7 = arith.constant dense<0.000000e+00> : vector<16x128xf32>
    %10 = tpu.matmul %5, %9, %cst_7 {dimension_numbers = #tpu.dot_dimension_numbers<[1], [0], [0], [1], [0, 0, 1, 1], [], []>} : vector<16x8xf32>, vector<8x128xf32>, vector<16x128xf32> -> vector<16x128xf32>
    %11 = arith.addf %8, %10 : vector<16x128xf32>
    %c0_8 = arith.constant 0 : index
    %c0_9 = arith.constant 0 : index
    %12 = vector.load %arg4[%c0_8, %c0_9] : memref<8x128xf32, #tpu.memory_space<vmem>>, vector<8x128xf32>
    %cst_10 = arith.constant dense<0.000000e+00> : vector<16x128xf32>
    %13 = tpu.matmul %6, %12, %cst_10 {dimension_numbers = #tpu.dot_dimension_numbers<[1], [0], [0], [1], [0, 0, 1, 1], [], []>} : vector<16x8xf32>, vector<8x128xf32>, vector<16x128xf32> -> vector<16x128xf32>
    %14 = arith.addf %11, %13 : vector<16x128xf32>
    %c0_11 = arith.constant 0 : index
    %c0_12 = arith.constant 0 : index
    %15 = vector.load %arg5[%c0_11, %c0_12] : memref<1x128xf32, #tpu.memory_space<vmem>>, vector<1x128xf32>
    %16 = vector.broadcast %15 : vector<1x128xf32> to vector<16x128xf32>
    %17 = arith.addf %14, %16 : vector<16x128xf32>
    %c0_13 = arith.constant 0 : index
    %c0_14 = arith.constant 0 : index
    %18 = vector.load %arg9[%c0_13, %c0_14] : memref<1x128xf32, #tpu.memory_space<vmem>>, vector<1x128xf32>
    %cst_15 = arith.constant dense<0.000000e+00> : vector<128xf32>
    %19 = vector.multi_reduction <add>, %17, %cst_15 [0] : vector<16x128xf32> to vector<128xf32>
    %20 = vector.shape_cast %19 : vector<128xf32> to vector<1x128xf32>
    %21 = arith.addf %18, %20 : vector<1x128xf32>
    %c0_16 = arith.constant 0 : index
    %c0_17 = arith.constant 0 : index
    %22 = vector.load %arg9[%c0_16, %c0_17] : memref<1x128xf32, #tpu.memory_space<vmem>>, vector<1x128xf32>
    tpu.vector_store %arg9[%c0_16, %c0_17], %21 {strides = array<i32>} : memref<1x128xf32, #tpu.memory_space<vmem>>, vector<1x128xf32>,
    %c0_18 = arith.constant 0 : index
    %c0_19 = arith.constant 0 : index
    %23 = vector.load %arg10[%c0_18, %c0_19] : memref<1x128xf32, #tpu.memory_space<vmem>>, vector<1x128xf32>
    %24 = arith.mulf %17, %17 : vector<16x128xf32>
    %cst_20 = arith.constant dense<0.000000e+00> : vector<128xf32>
    %25 = vector.multi_reduction <add>, %24, %cst_20 [0] : vector<16x128xf32> to vector<128xf32>
    %26 = vector.shape_cast %25 : vector<128xf32> to vector<1x128xf32>
    %27 = arith.addf %23, %26 : vector<1x128xf32>
    %c0_21 = arith.constant 0 : index
    %c0_22 = arith.constant 0 : index
    %28 = vector.load %arg10[%c0_21, %c0_22] : memref<1x128xf32, #tpu.memory_space<vmem>>, vector<1x128xf32>
    tpu.vector_store %arg10[%c0_21, %c0_22], %27 {strides = array<i32>} : memref<1x128xf32, #tpu.memory_space<vmem>>, vector<1x128xf32>,
    %c1_i32_23 = arith.constant 1 : i32
    %29 = arith.cmpi eq, %arg0, %c1_i32_23 : i32
    %30 = arith.extui %29 : i1 to i32
    %c0_i32_24 = arith.constant 0 : i32
    %31 = arith.cmpi ne, %30, %c0_i32_24 : i32
    scf.if %31 {
      %c0_25 = arith.constant 0 : index
      %c0_26 = arith.constant 0 : index
      %32 = vector.load %arg9[%c0_25, %c0_26] : memref<1x128xf32, #tpu.memory_space<vmem>>, vector<1x128xf32>
      %cst_27 = arith.constant 3.125000e-02 : f32
      %33 = vector.broadcast %cst_27 : f32 to vector<1x128xf32>
      %34 = arith.mulf %32, %33 : vector<1x128xf32>
      %c0_28 = arith.constant 0 : index
      %c0_29 = arith.constant 0 : index
      %35 = vector.load %arg10[%c0_28, %c0_29] : memref<1x128xf32, #tpu.memory_space<vmem>>, vector<1x128xf32>
      %cst_30 = arith.constant 3.125000e-02 : f32
      %36 = vector.broadcast %cst_30 : f32 to vector<1x128xf32>
      %37 = arith.mulf %35, %36 : vector<1x128xf32>
      %38 = arith.mulf %34, %34 : vector<1x128xf32>
      %39 = arith.subf %37, %38 : vector<1x128xf32>
      %cst_31 = arith.constant 0.000000e+00 : f32
      %40 = vector.broadcast %cst_31 : f32 to vector<1x128xf32>
      %41 = arith.maximumf %39, %40 : vector<1x128xf32>
      %c0_32 = arith.constant 0 : index
      %c0_33 = arith.constant 0 : index
      %42 = vector.load %arg6[%c0_32, %c0_33] : memref<1x128xf32, #tpu.memory_space<vmem>>, vector<1x128xf32>
      %cst_34 = arith.constant 9.99999974E-6 : f32
      %43 = vector.broadcast %cst_34 : f32 to vector<1x128xf32>
      %44 = arith.addf %41, %43 : vector<1x128xf32>
      %45 = math.rsqrt %44 : vector<1x128xf32>
      %46 = arith.mulf %42, %45 : vector<1x128xf32>
      %c0_35 = arith.constant 0 : index
      %c0_36 = arith.constant 0 : index
      %47 = vector.load %arg8[%c0_35, %c0_36] : memref<2x128xf32, #tpu.memory_space<vmem>>, vector<1x128xf32>
      tpu.vector_store %arg8[%c0_35, %c0_36], %46 {strides = array<i32>} : memref<2x128xf32, #tpu.memory_space<vmem>>, vector<1x128xf32>,
      %c0_37 = arith.constant 0 : index
      %c0_38 = arith.constant 0 : index
      %48 = vector.load %arg7[%c0_37, %c0_38] : memref<1x128xf32, #tpu.memory_space<vmem>>, vector<1x128xf32>
      %49 = arith.mulf %34, %46 : vector<1x128xf32>
      %50 = arith.subf %48, %49 : vector<1x128xf32>
      %c1 = arith.constant 1 : index
      %c0_39 = arith.constant 0 : index
      %51 = vector.load %arg8[%c1, %c0_39] : memref<2x128xf32, #tpu.memory_space<vmem>>, vector<1x128xf32>
      tpu.vector_store %arg8[%c1, %c0_39], %50 {strides = array<i32>} : memref<2x128xf32, #tpu.memory_space<vmem>>, vector<1x128xf32>,
    } else {
    }
    return
  }
  func.func @transform_0(%arg0: i32) -> (i32, i32, i32) {
    %c0_i32 = arith.constant 0 : i32
    %c0_i32_0 = arith.constant 0 : i32
    %c0_i32_1 = arith.constant 0 : i32
    return %arg0, %c0_i32, %c0_i32_0 : i32, i32, i32
  }
  func.func @transform_1(%arg0: i32) -> (i32, i32) {
    %c0_i32 = arith.constant 0 : i32
    %c0_i32_0 = arith.constant 0 : i32
    %c0_i32_1 = arith.constant 0 : i32
    return %c0_i32, %c0_i32_0 : i32, i32
  }
  func.func @transform_2(%arg0: i32) -> (i32, i32) {
    %c0_i32 = arith.constant 0 : i32
    %c0_i32_0 = arith.constant 0 : i32
    %c0_i32_1 = arith.constant 0 : i32
    return %c0_i32, %c0_i32_0 : i32, i32
  }
  func.func @transform_3(%arg0: i32) -> (i32, i32) {
    %c0_i32 = arith.constant 0 : i32
    %c0_i32_0 = arith.constant 0 : i32
    %c0_i32_1 = arith.constant 0 : i32
    return %c0_i32, %c0_i32_0 : i32, i32
  }
  func.func @transform_4(%arg0: i32) -> (i32, i32) {
    %c0_i32 = arith.constant 0 : i32
    %c0_i32_0 = arith.constant 0 : i32
    %c0_i32_1 = arith.constant 0 : i32
    return %c0_i32, %c0_i32_0 : i32, i32
  }
  func.func @transform_5(%arg0: i32) -> (i32, i32) {
    %c0_i32 = arith.constant 0 : i32
    %c0_i32_0 = arith.constant 0 : i32
    %c0_i32_1 = arith.constant 0 : i32
    return %c0_i32, %c0_i32_0 : i32, i32
  }
  func.func @transform_6(%arg0: i32) -> (i32, i32) {
    %c0_i32 = arith.constant 0 : i32
    %c0_i32_0 = arith.constant 0 : i32
    %c0_i32_1 = arith.constant 0 : i32
    return %c0_i32, %c0_i32_0 : i32, i32
  }
  func.func @transform_7(%arg0: i32) -> (i32, i32) {
    %c0_i32 = arith.constant 0 : i32
    %c0_i32_0 = arith.constant 0 : i32
    %c0_i32_1 = arith.constant 0 : i32
    return %c0_i32, %c0_i32_0 : i32, i32
  }
}

</mosaic_0001>

<llo_original>
// kernel: tpu_custom_call.1
$region0: #{tpu_custom_call.1}
  #allocation0 [shape = 'u32[]', space=smem, size = 0x4, offset = 0x4, fixed_abs, tag = 'smem constant byte address 0x4 - core index']
  #allocation1 [shape = 'u32[72,128]{1,0:T(1,128)}', space=vmem, size = 0x9000, scoped, tag = 'internal scratch']
  #allocation2 [shape = 'f32[1,128]{1,0:T(1,128)}', space=vmem, size = 0x200, scoped, tag = 'scratch operand']
  #allocation3 [shape = 'f32[1,128]{1,0:T(1,128)}', space=vmem, size = 0x200, scoped, tag = 'scratch operand']
  %s0 = inlined_call_operand.vmem [shape: f32[2,16,8], index: 0, kind: input, shape index: {}]
  %s1 = inlined_call_operand.vmem [shape: f32[8,128], index: 1, kind: input, shape index: {}]
  %s2 = inlined_call_operand.vmem [shape: f32[8,128], index: 2, kind: input, shape index: {}]
  %s3 = inlined_call_operand.vmem [shape: f32[8,128], index: 3, kind: input, shape index: {}]
  %s4 = inlined_call_operand.vmem [shape: f32[1,128], index: 4, kind: input, shape index: {}]
  %s5 = inlined_call_operand.vmem [shape: f32[1,128], index: 5, kind: input, shape index: {}]
  %s6 = inlined_call_operand.vmem [shape: f32[1,128], index: 6, kind: input, shape index: {}]
  %s7 = inlined_call_operand.hbm [shape: f32[2,128], index: 7, kind: output, shape index: {}]
  %s8 = sld [smem:[#allocation0]]
  $region69: #{tpu_custom_call.1} parent=0
    _
  %s10 = ssub.s32 1, %s8
  %s11 = scalar_select 0, %s10, %s8
  $region1: #{tpu_custom_call.1} parent=0
    #allocation4 [shape = 'u8[1024]{0}', space=vmem, size = 0x400, scoped, tag = 'output window, operand 0, single buffered']
    #allocation5 [shape = 's32[2]{0}', space=sflag, size = 0x8, scoped, tag = 'scoped memory for tpu_custom_call.1']
    %12 = vsyncpa [#allocation5], 0
    loop: start=0, step=1, limit=4
    $region2: #{tpu_custom_call.1} parent=1 // loop_pre_header
      _
    $region3: #{tpu_custom_call.1} parent=1 // loop_header
      %s14 = sphi 0, %s18
      %p15 = scmp.ge.s32.totalorder %s14, 4
      %s24 = sphi 0, %s26
      %s27 = sphi 0, %s24
      %s28 = sphi 0, %s27
      %s44 = sphi 0, %s28
      %s48 = sphi 0, %s48
      %s50 = sphi 0, %s48
      %s51 = sphi 0, %s50
      %s65 = sphi 0, %s51
      %s69 = sphi 0, %s69
      %s71 = sphi 0, %s69
      %s72 = sphi 0, %s71
      %s86 = sphi 0, %s72
      %s90 = sphi 0, %s90
      %s92 = sphi 0, %s90
      %s93 = sphi 0, %s92
      %s107 = sphi 0, %s93
      %s111 = sphi 0, %s111
      %s113 = sphi 0, %s111
      %s114 = sphi 0, %s113
      %s128 = sphi 0, %s114
      %s132 = sphi 0, %s132
      %s134 = sphi 0, %s132
      %s135 = sphi 0, %s134
      %s149 = sphi 0, %s135
      %s153 = sphi 0, %s153
      %s155 = sphi 0, %s153
      %s156 = sphi 0, %s155
      %s170 = sphi 0, %s156
      %s174 = sphi 0, %s174
      %s176 = sphi 0, %s174
      %s177 = sphi 0, %s176
      %s191 = sphi 0, %s177
    $region4: #{tpu_custom_call.1} parent=1 // loop_header_branch
      %17 = sbr.rel (%p15) target = $region8
    $region5: #{tpu_custom_call.1} parent=1 // loop_body
      %s19 = ssub.s32 %s14, 1
      %s20 = ssub.s32 %s14, 2
      %s21 = sadd.s32 %s14, 1
      %s22 = ssub.s32 %s14, %s21
      %p23 = scmp.eq.s32.totalorder %s22, 0
      %s25 = sadd.s32 %s24, 1
      %s26 = scalar_select %p23, %s24, %s25
      %p29 = pneg %p23
      %p30 = scmp.eq.s32.totalorder %s14, 1
      %p31 = por %p29, %p30
      %p32 = scmp.ne.s32.totalorder %s24, %s27
      %p33 = scmp.eq.s32.totalorder %s14, 0
      %p34 = por %p32, %p33
      %p35 = scmp.ne.s32.totalorder %s24, %s27
      %p36 = scmp.eq.s32.totalorder %s19, 1
      %p37 = por %p35, %p36
      %p38 = scmp.ne.s32.totalorder %s27, %s28
      %p39 = scmp.eq.s32.totalorder %s19, 0
      %p40 = por %p38, %p39
      %p41 = scmp.ne.s32.totalorder %s27, %s28
      %p42 = scmp.eq.s32.totalorder %s20, 1
      %p43 = por %p41, %p42
      %p45 = scmp.ne.s32.totalorder %s28, %s44
      %p46 = scmp.eq.s32.totalorder %s20, 0
      %p47 = por %p45, %p46
      %s49 = sadd.s32 %s48, 1
      %p52 = scmp.eq.s32.totalorder %s14, 1
      %p53 = scmp.ne.s32.totalorder %s48, %s50
      %p54 = scmp.eq.s32.totalorder %s14, 0
      %p55 = por %p53, %p54
      %p56 = scmp.ne.s32.totalorder %s48, %s50
      %p57 = scmp.eq.s32.totalorder %s19, 1
      %p58 = por %p56, %p57
      %p59 = scmp.ne.s32.totalorder %s50, %s51
      %p60 = scmp.eq.s32.totalorder %s19, 0
      %p61 = por %p59, %p60
      %p62 = scmp.ne.s32.totalorder %s50, %s51
      %p63 = scmp.eq.s32.totalorder %s20, 1
      %p64 = por %p62, %p63
      %p66 = scmp.ne.s32.totalorder %s51, %s65
      %p67 = scmp.eq.s32.totalorder %s20, 0
      %p68 = por %p66, %p67
      %s70 = sadd.s32 %s69, 1
      %p73 = scmp.eq.s32.totalorder %s14, 1
      %p74 = scmp.ne.s32.totalorder %s69, %s71
      %p75 = scmp.eq.s32.totalorder %s14, 0
      %p76 = por %p74, %p75
      %p77 = scmp.ne.s32.totalorder %s69, %s71
      %p78 = scmp.eq.s32.totalorder %s19, 1
      %p79 = por %p77, %p78
      %p80 = scmp.ne.s32.totalorder %s71, %s72
      %p81 = scmp.eq.s32.totalorder %s19, 0
      %p82 = por %p80, %p81
      %p83 = scmp.ne.s32.totalorder %s71, %s72
      %p84 = scmp.eq.s32.totalorder %s20, 1
      %p85 = por %p83, %p84
      %p87 = scmp.ne.s32.totalorder %s72, %s86
      %p88 = scmp.eq.s32.totalorder %s20, 0
      %p89 = por %p87, %p88
      %s91 = sadd.s32 %s90, 1
      %p94 = scmp.eq.s32.totalorder %s14, 1
      %p95 = scmp.ne.s32.totalorder %s90, %s92
      %p96 = scmp.eq.s32.totalorder %s14, 0
      %p97 = por %p95, %p96
      %p98 = scmp.ne.s32.totalorder %s90, %s92
      %p99 = scmp.eq.s32.totalorder %s19, 1
      %p100 = por %p98, %p99
      %p101 = scmp.ne.s32.totalorder %s92, %s93
      %p102 = scmp.eq.s32.totalorder %s19, 0
      %p103 = por %p101, %p102
      %p104 = scmp.ne.s32.totalorder %s92, %s93
      %p105 = scmp.eq.s32.totalorder %s20, 1
      %p106 = por %p104, %p105
      %p108 = scmp.ne.s32.totalorder %s93, %s107
      %p109 = scmp.eq.s32.totalorder %s20, 0
      %p110 = por %p108, %p109
      %s112 = sadd.s32 %s111, 1
      %p115 = scmp.eq.s32.totalorder %s14, 1
      %p116 = scmp.ne.s32.totalorder %s111, %s113
      %p117 = scmp.eq.s32.totalorder %s14, 0
      %p118 = por %p116, %p117
      %p119 = scmp.ne.s32.totalorder %s111, %s113
      %p120 = scmp.eq.s32.totalorder %s19, 1
      %p121 = por %p119, %p120
      %p122 = scmp.ne.s32.totalorder %s113, %s114
      %p123 = scmp.eq.s32.totalorder %s19, 0
      %p124 = por %p122, %p123
      %p125 = scmp.ne.s32.totalorder %s113, %s114
      %p126 = scmp.eq.s32.totalorder %s20, 1
      %p127 = por %p125, %p126
      %p129 = scmp.ne.s32.totalorder %s114, %s128
      %p130 = scmp.eq.s32.totalorder %s20, 0
      %p131 = por %p129, %p130
      %s133 = sadd.s32 %s132, 1
      %p136 = scmp.eq.s32.totalorder %s14, 1
      %p137 = scmp.ne.s32.totalorder %s132, %s134
      %p138 = scmp.eq.s32.totalorder %s14, 0
      %p139 = por %p137, %p138
      %p140 = scmp.ne.s32.totalorder %s132, %s134
      %p141 = scmp.eq.s32.totalorder %s19, 1
      %p142 = por %p140, %p141
      %p143 = scmp.ne.s32.totalorder %s134, %s135
      %p144 = scmp.eq.s32.totalorder %s19, 0
      %p145 = por %p143, %p144
      %p146 = scmp.ne.s32.totalorder %s134, %s135
      %p147 = scmp.eq.s32.totalorder %s20, 1
      %p148 = por %p146, %p147
      %p150 = scmp.ne.s32.totalorder %s135, %s149
      %p151 = scmp.eq.s32.totalorder %s20, 0
      %p152 = por %p150, %p151
      %s154 = sadd.s32 %s153, 1
      %p157 = scmp.eq.s32.totalorder %s14, 1
      %p158 = scmp.ne.s32.totalorder %s153, %s155
      %p159 = scmp.eq.s32.totalorder %s14, 0
      %p160 = por %p158, %p159
      %p161 = scmp.ne.s32.totalorder %s153, %s155
      %p162 = scmp.eq.s32.totalorder %s19, 1
      %p163 = por %p161, %p162
      %p164 = scmp.ne.s32.totalorder %s155, %s156
      %p165 = scmp.eq.s32.totalorder %s19, 0
      %p166 = por %p164, %p165
      %p167 = scmp.ne.s32.totalorder %s155, %s156
      %p168 = scmp.eq.s32.totalorder %s20, 1
      %p169 = por %p167, %p168
      %p171 = scmp.ne.s32.totalorder %s156, %s170
      %p172 = scmp.eq.s32.totalorder %s20, 0
      %p173 = por %p171, %p172
      %s175 = sadd.s32 %s174, 1
      %p178 = scmp.eq.s32.totalorder %s14, 1
      %p179 = scmp.ne.s32.totalorder %s174, %s176
      %p180 = scmp.eq.s32.totalorder %s14, 0
      %p181 = por %p179, %p180
      %p182 = scmp.ne.s32.totalorder %s174, %s176
      %p183 = scmp.eq.s32.totalorder %s19, 1
      %p184 = por %p182, %p183
      %p185 = scmp.ne.s32.totalorder %s176, %s177
      %p186 = scmp.eq.s32.totalorder %s19, 0
      %p187 = por %p185, %p186
      %p188 = scmp.ne.s32.totalorder %s176, %s177
      %p189 = scmp.eq.s32.totalorder %s20, 1
      %p190 = por %p188, %p189
      %p192 = scmp.ne.s32.totalorder %s177, %s191
      %p193 = scmp.eq.s32.totalorder %s20, 0
      %p194 = por %p192, %p193
      %p195 = scmp.le.s32.totalorder 1, %s14
      %p196 = scmp.lt.s32.totalorder %s14, 3
      %p197 = pnand %p195, %p196
      %p198 = pneg %p197
      // Predicated region
      $region9: #{tpu_custom_call.1} parent=5 // pred_check
        _
      $region10: #{tpu_custom_call.1} parent=5 // pred_check_branch
        %200 = sbr.rel (%p197) target = $region12
      $region11: #{tpu_custom_call.1} parent=5 // pred_region
        %s201 = ssub.s32 %s14, 1
        // Predicated region
        $region13: #{tpu_custom_call.1} parent=11 // pred_check
          %p202 = pneg %p61
        $region14: #{tpu_custom_call.1} parent=11 // pred_check_branch
          %204 = sbr.rel (%p202) target = $region16
        $region15: #{tpu_custom_call.1} parent=11 // pred_region
          _
        $region16: #{tpu_custom_call.1} parent=11 // pred_fallthru
          _
        // Predicated region
        $region17: #{tpu_custom_call.1} parent=11 // pred_check
          %p205 = pneg %p82
        $region18: #{tpu_custom_call.1} parent=11 // pred_check_branch
          %207 = sbr.rel (%p205) target = $region20
        $region19: #{tpu_custom_call.1} parent=11 // pred_region
          _
        $region20: #{tpu_custom_call.1} parent=11 // pred_fallthru
          _
        // Predicated region
        $region21: #{tpu_custom_call.1} parent=11 // pred_check
          %p208 = pneg %p103
        $region22: #{tpu_custom_call.1} parent=11 // pred_check_branch
          %210 = sbr.rel (%p208) target = $region24
        $region23: #{tpu_custom_call.1} parent=11 // pred_region
          _
        $region24: #{tpu_custom_call.1} parent=11 // pred_fallthru
          _
        // Predicated region
        $region25: #{tpu_custom_call.1} parent=11 // pred_check
          %p211 = pneg %p124
        $region26: #{tpu_custom_call.1} parent=11 // pred_check_branch
          %213 = sbr.rel (%p211) target = $region28
        $region27: #{tpu_custom_call.1} parent=11 // pred_region
          _
        $region28: #{tpu_custom_call.1} parent=11 // pred_fallthru
          _
        // Predicated region
        $region29: #{tpu_custom_call.1} parent=11 // pred_check
          %p214 = pneg %p145
        $region30: #{tpu_custom_call.1} parent=11 // pred_check_branch
          %216 = sbr.rel (%p214) target = $region32
        $region31: #{tpu_custom_call.1} parent=11 // pred_region
          _
        $region32: #{tpu_custom_call.1} parent=11 // pred_fallthru
          _
        // Predicated region
        $region33: #{tpu_custom_call.1} parent=11 // pred_check
          %p217 = pneg %p166
        $region34: #{tpu_custom_call.1} parent=11 // pred_check_branch
          %219 = sbr.rel (%p217) target = $region36
        $region35: #{tpu_custom_call.1} parent=11 // pred_region
          _
        $region36: #{tpu_custom_call.1} parent=11 // pred_fallthru
          _
      $region12: #{tpu_custom_call.1} parent=5 // pred_fallthru
        _
      %p220 = scmp.lt.s32.totalorder %s14, 2
      // Predicated region
      $region37: #{tpu_custom_call.1} parent=5 // pred_check
        %p221 = pneg %p220
      $region38: #{tpu_custom_call.1} parent=5 // pred_check_branch
        %223 = sbr.rel (%p221) target = $region40
      $region39: #{tpu_custom_call.1} parent=5 // pred_region
        // Predicated region
        $region41: #{tpu_custom_call.1} parent=39 // pred_check
          %p224 = pneg %p34
        $region42: #{tpu_custom_call.1} parent=39 // pred_check_branch
          %226 = sbr.rel (%p224) target = $region44
        $region43: #{tpu_custom_call.1} parent=39 // pred_region
          %p227 = scmp.lt.s32.totalorder %s14, 1
          %s228 = scalar_select %p227, %s14, 1
          %s229 = smul.addr %s228, 2
          %s230 = smul.addr %s229, 8
          %s231 = scalar_lea.vmem %s0, %s230
        $region44: #{tpu_custom_call.1} parent=39 // pred_fallthru
          _
      $region40: #{tpu_custom_call.1} parent=5 // pred_fallthru
        _
      %p232 = scmp.le.s32.totalorder 1, %s14
      %p233 = scmp.lt.s32.totalorder %s14, 3
      %p234 = pnand %p232, %p233
      %p235 = pneg %p234
      // Predicated region
      $region45: #{tpu_custom_call.1} parent=5 // pred_check
        _
      $region46: #{tpu_custom_call.1} parent=5 // pred_check_branch
        %237 = sbr.rel (%p234) target = $region48
      $region47: #{tpu_custom_call.1} parent=5 // pred_region
        %s238 = ssub.s32 %s14, 1
        %p239 = scmp.lt.s32.totalorder %s19, 1
        %s240 = scalar_select %p239, %s19, 1
        %s241 = smul.addr %s240, 2
        %s242 = smul.addr %s241, 8
        %s243 = scalar_lea.vmem %s0, %s242
        %p244 = pneg %p40
        %p245 = pneg %p37
        %p246 = pneg %p61
        %p247 = pneg %p58
        %p248 = pneg %p82
        %p249 = pneg %p79
        %p250 = pneg %p103
        %p251 = pneg %p100
        %p252 = pneg %p124
        %p253 = pneg %p121
        %p254 = pneg %p145
        %p255 = pneg %p142
        %p256 = pneg %p166
        %p257 = pneg %p163
        %p258 = pneg %p187
        %p259 = pneg %p184
        %p260 = scmp.lt.s32.totalorder %s19, 1
        %s261 = scalar_select %p260, %s19, 1
        %s262 = smul.addr %s261, 2
        %s263 = smul.addr %s262, 8
        %s264 = scalar_lea.vmem %s0, %s263
        %p265 = scmp.eq.s32.totalorder %s19, 0
        // Predicated region
        $region49: #{tpu_custom_call.1} parent=47 // pred_check
          %p266 = pneg %p265
        $region50: #{tpu_custom_call.1} parent=47 // pred_check_branch
          %268 = sbr.rel (%p266) target = $region52
        $region51: #{tpu_custom_call.1} parent=47 // pred_region
          %269 = vst [vmem:[#allocation2] sm:$0x1] 0.0
          %270 = vst [vmem:[#allocation3] sm:$0x1] 0.0
        $region52: #{tpu_custom_call.1} parent=47 // pred_fallthru
          _
        %v271 = vld [vmem:[%s264] sm:$0xff]
        %v272 = vld [vmem:[%s264 + $0x8] sm:$0xff]
        %v273 = vrot.slane %v271, 7
        %v274 = vrot.slane %v272, 7
        %v275 = vlaneseq
        %v276 = vshrl.u32 %v275, 7
        %vm277 = vcmp.lt.s32.totalorder %v276, 1
        %v278 = vsel %vm277, %v273, %v274
        %v279 = vsel %vm277, %v274, %v273
        %v280 = vrot.slane %v271, 1
        %v281 = vrot.slane %v272, 1
        %vm282 = vcmp.lt.s32.totalorder %v276, 7
        %v283 = vsel %vm282, %v280, %v281
        %v284 = vsel %vm282, %v281, %v280
        %v285 = vld [vmem:[%s1] sm:$0xff]
        %v286 = vld [vmem:[%s2] sm:$0xff]
        %vm287 = vcmask 64512
        %v289 = vsel %vm287, %v279, 0
        %v292 = vsel %vm287, %v278, 0
        %294 = vmatpush.msra.mxu0 0.0
        %295 = vmatpush.msra.mxu0 0.0
        %296 = vmatpush.msra.mxu0 0.0
        %297 = vmatpush.msra.mxu0 0.0
        %298 = vmatpush.msra.mxu0 0.0
        %299 = vmatpush.msra.mxu0 0.0
        %300 = vmatpush.msra.mxu0 0.0
        %301 = vmatpush.msra.mxu0 0.0
        %302 = vmatpush.msra.mxu0 0.0
        %303 = vmatpush.msra.mxu0 0.0
        %304 = vmatpush.msra.mxu0 0.0
        %305 = vmatpush.msra.mxu0 0.0
        %306 = vmatpush.msra.mxu0 0.0
        %307 = vmatpush.msra.mxu0 0.0
        %308 = vmatpush.msra.mxu0 0.0
        %309 = vmatpush.msra.mxu0 %v286
        %310 = vmatmul.f32.gmra.mxu0 %v289
        %v311 = vpop.f32.mrf.mxu0
        %v312 = vadd.f32 0.0, %v311
        %313 = vmatmul.f32.gmra.mxu0 %v292
        %v314 = vpop.f32.mrf.mxu0
        %v315 = vadd.f32 0.0, %v314
        %316 = vdwg.mxu0
        %v318 = vsel %vm287, %v271, 0
        %v321 = vsel %vm287, %v272, 0
        %323 = vmatpush.msra.mxu0 0.0
        %324 = vmatpush.msra.mxu0 0.0
        %325 = vmatpush.msra.mxu0 0.0
        %326 = vmatpush.msra.mxu0 0.0
        %327 = vmatpush.msra.mxu0 0.0
        %328 = vmatpush.msra.mxu0 0.0
        %329 = vmatpush.msra.mxu0 0.0
        %330 = vmatpush.msra.mxu0 0.0
        %331 = vmatpush.msra.mxu0 0.0
        %332 = vmatpush.msra.mxu0 0.0
        %333 = vmatpush.msra.mxu0 0.0
        %334 = vmatpush.msra.mxu0 0.0
        %335 = vmatpush.msra.mxu0 0.0
        %336 = vmatpush.msra.mxu0 0.0
        %337 = vmatpush.msra.mxu0 0.0
        %338 = vmatpush.msra.mxu0 %v285
        %339 = vmatmul.f32.gmra.mxu0 %v318
        %v340 = vpop.f32.mrf.mxu0
        %v341 = vadd.f32 %v312, %v340
        %342 = vmatmul.f32.gmra.mxu0 %v321
        %v343 = vpop.f32.mrf.mxu0
        %v344 = vadd.f32 %v315, %v343
        %345 = vdwg.mxu0
        %v346 = vld [vmem:[%s3] sm:$0xff]
        %v348 = vsel %vm287, %v283, 0
        %v351 = vsel %vm287, %v284, 0
        %353 = vmatpush.msra.mxu0 0.0
        %354 = vmatpush.msra.mxu0 0.0
        %355 = vmatpush.msra.mxu0 0.0
        %356 = vmatpush.msra.mxu0 0.0
        %357 = vmatpush.msra.mxu0 0.0
        %358 = vmatpush.msra.mxu0 0.0
        %359 = vmatpush.msra.mxu0 0.0
        %360 = vmatpush.msra.mxu0 0.0
        %361 = vmatpush.msra.mxu0 0.0
        %362 = vmatpush.msra.mxu0 0.0
        %363 = vmatpush.msra.mxu0 0.0
        %364 = vmatpush.msra.mxu0 0.0
        %365 = vmatpush.msra.mxu0 0.0
        %366 = vmatpush.msra.mxu0 0.0
        %367 = vmatpush.msra.mxu0 0.0
        %368 = vmatpush.msra.mxu0 %v346
        %369 = vmatmul.f32.gmra.mxu0 %v348
        %v370 = vpop.f32.mrf.mxu0
        %v371 = vadd.f32 0.0, %v370
        %372 = vmatmul.f32.gmra.mxu0 %v351
        %v373 = vpop.f32.mrf.mxu0
        %v374 = vadd.f32 0.0, %v373
        %375 = vdwg.mxu0
        %v376 = vadd.f32 %v341, %v371
        %v377 = vadd.f32 %v344, %v374
        %v378 = vld [vmem:[%s4] sm:$0x1]
        %v380 = vperm.slane %v378, 0
        %v382 = vadd.f32 %v376, %v380
        %v383 = vadd.f32 %v377, %v380
        %v384 = vld [vmem:[#allocation2] sm:$0x1]
        %v385 = vadd.f32 %v382, %v383
        %v386 = vrot.slane %v385, 4
        %v387 = vadd.f32 %v385, %v386
        %v388 = vrot.slane %v387, 2
        %v389 = vadd.f32 %v387, %v388
        %v390 = vrot.slane %v389, 1
        %v391 = vadd.f32 %v389, %v390
        %v392 = vadd.f32 %v384, %v391
        %393 = vst [vmem:[#allocation2] sm:$0x1] %v392
        %v394 = vld [vmem:[#allocation3] sm:$0x1]
        %v395 = vmul.f32 %v382, %v382
        %v396 = vmul.f32 %v383, %v383
        %v397 = vadd.f32 %v395, %v396
        %v398 = vrot.slane %v397, 4
        %v399 = vadd.f32 %v397, %v398
        %v400 = vrot.slane %v399, 2
        %v401 = vadd.f32 %v399, %v400
        %v402 = vrot.slane %v401, 1
        %v403 = vadd.f32 %v401, %v402
        %v404 = vadd.f32 %v394, %v403
        %405 = vst [vmem:[#allocation3] sm:$0x1] %v404
        %p406 = scmp.eq.s32.totalorder %s19, 1
        // Predicated region
        $region53: #{tpu_custom_call.1} parent=47 // pred_check
          %p407 = pneg %p406
        $region54: #{tpu_custom_call.1} parent=47 // pred_check_branch
          %409 = sbr.rel (%p407) target = $region56
        $region55: #{tpu_custom_call.1} parent=47 // pred_region
          %v410 = vld [vmem:[#allocation2] sm:$0x1]
          %v411 = vmul.f32 %v410, 0.03125
          %v412 = vld [vmem:[#allocation3] sm:$0x1]
          %v413 = vmul.f32 %v412, 0.03125
          %v414 = vmul.f32 %v411, %v411
          %v415 = vsub.f32 %v413, %v414
          %v416 = vmax.f32 %v415, 0.0
          %v417 = vld [vmem:[%s5] sm:$0x1]
          %v418 = vadd.f32 %v416, 1e-05
          %v419 = vrsqrt.pop %v418
          %v420 = vmul.f32 %v419, %v418
          %v421 = vmul.f32 %v420, %v419
          %v422 = vmul.f32 0.5, %v421
          %v423 = vsub.f32 1.5, %v422
          %v424 = vmul.f32 %v419, %v423
          %vm425 = vweird.f32 %v418
          %vm426 = vweird.f32 %v419
          %vm427 = vmor %vm425, %vm426
          %v428 = vsel %vm427, %v419, %v424
          %v429 = vmul.f32 %v417, %v428
          %430 = vst [vmem:[#allocation4] sm:$0x1] %v429
          %v431 = vld [vmem:[%s6] sm:$0x1]
          %v432 = vmul.f32 %v411, %v429
          %v433 = vsub.f32 %v431, %v432
          %434 = vst [vmem:[#allocation4 + $0x1] sm:$0x1] %v433
        $region56: #{tpu_custom_call.1} parent=47 // pred_fallthru
          _
        // Predicated region
        $region57: #{tpu_custom_call.1} parent=47 // pred_check
          %p435 = pneg %p184
        $region58: #{tpu_custom_call.1} parent=47 // pred_check_branch
          %437 = sbr.rel (%p435) target = $region60
        $region59: #{tpu_custom_call.1} parent=47 // pred_region
          %439 = vsyncadd [#allocation5], 0
          %s441 = sshll.u32 [#allocation4], 4
          %s442 = int_to_ptr.vmem [resolvable:$true] %s441
          %s443 = sshll.u32 %s7, 4
          %s444 = int_to_ptr.hbm [resolvable:$true] %s443
          %446 = dma.vmem_to_hbm [thread:$0]  %s442, 32, %s444, [#allocation5]
        $region60: #{tpu_custom_call.1} parent=47 // pred_fallthru
          _
        // Predicated region
        $region61: #{tpu_custom_call.1} parent=47 // pred_check
          %p447 = pneg %p184
        $region62: #{tpu_custom_call.1} parent=47 // pred_check_branch
          %449 = sbr.rel (%p447) target = $region64
        $region63: #{tpu_custom_call.1} parent=47 // pred_region
          %451 = dma.done [#allocation5], 32
        $region64: #{tpu_custom_call.1} parent=47 // pred_fallthru
          _
      $region48: #{tpu_custom_call.1} parent=5 // pred_fallthru
        _
      %p452 = scmp.le.s32.totalorder 2, %s14
      // Predicated region
      $region65: #{tpu_custom_call.1} parent=5 // pred_check
        %p453 = pneg %p452
      $region66: #{tpu_custom_call.1} parent=5 // pred_check_branch
        %455 = sbr.rel (%p453) target = $region68
      $region67: #{tpu_custom_call.1} parent=5 // pred_region
        %s456 = ssub.s32 %s14, 2
      $region68: #{tpu_custom_call.1} parent=5 // pred_fallthru
        _
    $region6: #{tpu_custom_call.1} parent=1 // loop_footer
      %s18 = sadd.s32 1, %s14
    $region7: #{tpu_custom_call.1} parent=1 // loop_footer_branch
      %13 = sbr.rel target = $region3
    $region8: #{tpu_custom_call.1} parent=1 // loop_exit
      _
    %457 = vsyncpa [#allocation5], 1
    %s458 = scalar_lea.sflag [#allocation5], 1
    %459 = vsyncpa %s458, 1

</llo_original>
